<compile_context>
chip_gen: v6e
topology: v6e:2x2x1
jax: 0.10.0
libtpu: 0.0.40
codegen_flags: <defaults>
</compile_context>

<pallas_src>
from functools import partial

import numpy as np
import jax
import jax.numpy as jnp
from jax import lax
from jax.experimental import pallas as pl
from jax.experimental.pallas import tpu as pltpu


@partial(jax.jit, static_argnames=("mxu_dtype",))
def _mean_loss_fused(embedded, w_stack, b_stack, *, mxu_dtype=jnp.bfloat16):
    """All C classifiers in one Pallas launch (C folded into the matmul lane dim).

    embedded: [N, D], w_stack: [C, D, K], b_stack: [C, K]
    Returns losses [C] (f32) and means [C, K, D] (f32).
    """
    N, D = embedded.shape
    C, D2, K = w_stack.shape
    assert D2 == D, "classifier weight dim must match embedding dim"
    CK = C * K
    exact = (jnp.dtype(mxu_dtype) == jnp.dtype(jnp.float32))
    inv_n = float(1.0 / N)

    def kernel(x_ref, w_ref, b_ref, loss_ref, means_ref):
        x_m = x_ref[...]                                    # [N, D]   MXU staging dtype
        w = w_ref[...]                                      # [D, CK]
        b = b_ref[...].astype(jnp.float32)                  # [1, CK]
        x = x_m.astype(jnp.float32)                         # f32 for element-wise math

        # (1) encode: ALL classifiers in one MXU matmul (lane dim = C*K)
        logits = jnp.dot(x_m, w, preferred_element_type=jnp.float32) + b      # [N, CK]

        # (2) per-classifier softmax over its K lanes (C is a small static constant)
        parts = []
        for c in range(C):
            lg = logits[:, c * K:(c + 1) * K]                                  # [N, K]
            mx = jnp.max(lg, axis=1, keepdims=True)
            ex = jnp.exp(lg - mx)
            den = jnp.sum(ex, axis=1, keepdims=True)
            # approx reciprocal -> EUP slot (perf mode); exact in the f32 verification mode
            parts.append(ex * pl.reciprocal(den, approx=not exact))
        a = parts[0] if C == 1 else jnp.concatenate(parts, axis=1)             # [N, CK] f32

        # (3) per-cluster label sums & frequencies, batched over classifiers (MXU)
        a_m = a.astype(x_m.dtype)
        sums = lax.dot_general(a_m, x_m, (((0,), (0,)), ((), ())),
                               preferred_element_type=jnp.float32)             # [CK, D]
        freq = lax.dot_general(a_m, jnp.ones((N, 1), x_m.dtype),
                               (((0,), (0,)), ((), ())),
                               preferred_element_type=jnp.float32)             # [CK, 1]
        # softmax keeps freq > 0; exact reciprocal preserves the means / 1e-4 check.
        means = sums * pl.reciprocal(freq, approx=False)                       # [CK, D] f32
        means_ref[...] = means

        # (4) squared euclidean distance ||x_n - mean_ck||^2 for every classifier/cluster
        x2 = jnp.sum(x * x, axis=1, keepdims=True)                             # [N, 1]
        # m2 as a [1, CK] row via a tiny matmul (avoids a sublane->lane transpose)
        m2 = lax.dot_general(jnp.ones((1, D), jnp.float32), means * means,
                             (((1,), (1,)), ((), ())),
                             preferred_element_type=jnp.float32)               # [1, CK]
        xm = lax.dot_general(x_m, means.astype(x_m.dtype),
                             (((1,), (1,)), ((), ())),
                             preferred_element_type=jnp.float32)               # [N, CK]
        dist = jnp.maximum(x2 + m2 - 2.0 * xm, 0.0)                            # clamp cancellation

        # (5) loss_c = mean_n sum_k dist * assignments * soft_assignments (both = a)
        wsum = jnp.sum(dist * (a * a), axis=0, keepdims=True)                  # [1, CK]
        row = lax.broadcasted_iota(jnp.int32, (CK, C), 0)
        col = lax.broadcasted_iota(jnp.int32, (CK, C), 1)
        seg = ((row >= col * K) & (row < (col + 1) * K)).astype(jnp.float32)   # [CK, C] block mask
        loss_ref[...] = jnp.dot(wsum, seg,
                                preferred_element_type=jnp.float32) * inv_n    # [1, C]

    # --- staging (no HBM concat / padding of x; weights re-laid out as [D, C*K]) ---
    x_m = embedded.astype(mxu_dtype)                                           # [N, D]
    w_cat = jnp.transpose(w_stack, (1, 0, 2)).reshape(D, CK).astype(mxu_dtype) # [D, CK]
    b_cat = b_stack.reshape(1, CK).astype(jnp.float32)                         # [1, CK]

    # Explicit VMEM budget: staged inputs + f32 intermediates + headroom (conservative).
    elt = jnp.dtype(mxu_dtype).itemsize
    est = (elt * (N * D + D * CK)
           + 4 * (N * D + 8 * N * CK + 6 * CK * D + 4 * N + 4096))
    vmem_limit = int(min(max(4 * est, 8 * 2 ** 20), 48 * 2 ** 20))

    losses, means = pl.pallas_call(
        kernel,
        out_shape=(jax.ShapeDtypeStruct((1, C), jnp.float32),
                   jax.ShapeDtypeStruct((CK, D), jnp.float32)),
        in_specs=[pl.BlockSpec(memory_space=pltpu.MemorySpace.VMEM) for _ in range(3)],
        out_specs=(pl.BlockSpec(memory_space=pltpu.MemorySpace.VMEM),
                   pl.BlockSpec(memory_space=pltpu.MemorySpace.VMEM)),
        compiler_params=pltpu.CompilerParams(vmem_limit_bytes=vmem_limit),
    )(x_m, w_cat, b_cat)

    return losses[0], means.reshape(C, K, D)


class MeanLossPallas:
    """JAX/Pallas equivalent of MeanLoss.forward (soft_assignments=True, use_clf=True)."""

    def __init__(self, weight=1.0, minimum_agreement=0.01, mxu_dtype=jnp.bfloat16):
        self.weight = weight
        self.minimum_agreement = minimum_agreement
        # bf16 staging for the MXU (production / perf path); pass jnp.float32 for exact mode.
        self.mxu_dtype = mxu_dtype
        self.label_means_dict = None

    def forward(self, embedded, classifier_dict, weight_dict=None):
        names = list(classifier_dict.keys())
        shapes = {tuple(np.shape(classifier_dict[n][0])) for n in names}
        assert len(shapes) == 1, "all classifiers must share (D, K) to be fused into one launch"
        w_stack = jnp.stack([classifier_dict[n][0] for n in names], axis=0)    # [C, D, K]
        b_stack = jnp.stack([classifier_dict[n][1] for n in names], axis=0)    # [C, K]

        losses, means = _mean_loss_fused(embedded, w_stack, b_stack,
                                         mxu_dtype=self.mxu_dtype)             # [C], [C, K, D]

        if self.label_means_dict is None:
            self.label_means_dict = {n: None for n in names}
        for i, n in enumerate(names):
            self.label_means_dict[n] = means[i]

        if weight_dict is None:
            total = jnp.sum(losses)
        else:
            wvec = np.array(
                [weight_dict[n] if weight_dict[n] > self.minimum_agreement else 0.0
                 for n in names], dtype=np.float32)
            total = jnp.sum(jnp.asarray(wvec) * losses)

        # One host transfer for the debug dict (no per-classifier sync).
        loss_host = np.asarray(jax.device_get(losses))
        loss_dict = {n: float(loss_host[i]) for i, n in enumerate(names)}
        return self.weight * total, loss_dict


def _reference_single(embedded, w, b):
    """Pure-JAX reference mirroring the PyTorch math (f32)."""
    logits = embedded @ w + b[None, :]
    a = jax.nn.softmax(logits, axis=1)
    label_sums = (embedded[:, None, :] * a[:, :, None]).sum(0)      # [K, D]
    freq = a.sum(0)[:, None]                                        # [K, 1]
    means = label_sums / freq
    diff = means[None, :, :] - embedded[:, None, :]                 # [N, K, D]
    dist = (diff * diff).sum(-1)                                    # [N, K]
    loss = (dist * a * a).sum(1).mean()
    return loss, means


if __name__ == "__main__":
    N, D, K = 64, 32, 8  # batch, embedding dim, number of clusters
    key = jax.random.PRNGKey(0)
    k_x, k_w1, k_b1, k_w2, k_b2 = jax.random.split(key, 5)

    embedded = jax.random.normal(k_x, (N, D), dtype=jnp.float32)
    # deterministic synthetic classifier parameters (c_i.encode = linear layer)
    classifier_dict = {
        "kmeans": (0.1 * jax.random.normal(k_w1, (D, K), dtype=jnp.float32),
                   0.01 * jax.random.normal(k_b1, (K,), dtype=jnp.float32)),
        "spectral": (0.1 * jax.random.normal(k_w2, (D, K), dtype=jnp.float32),
                     0.01 * jax.random.normal(k_b2, (K,), dtype=jnp.float32)),
    }

    # --- exact mode (f32 MXU staging, exact reciprocals): tight check vs. reference ---
    mean_loss = MeanLossPallas(weight=1.0, mxu_dtype=jnp.float32)
    total_loss, loss_dict = mean_loss.forward(embedded, classifier_dict)
    total_loss = jax.block_until_ready(total_loss)

    ref_total = 0.0
    for name, (w_i, b_i) in classifier_dict.items():
        ref_loss, ref_means = _reference_single(embedded, w_i, b_i)
        np.testing.assert_allclose(loss_dict[name], float(ref_loss), rtol=1e-4, atol=1e-4)
        np.testing.assert_allclose(np.asarray(mean_loss.label_means_dict[name]),
                                   np.asarray(ref_means), rtol=1e-4, atol=1e-4)
        ref_total += float(ref_loss)
    np.testing.assert_allclose(float(total_loss), ref_total, rtol=1e-4, atol=1e-4)

    # --- perf mode (default: bf16 MXU staging + approx softmax reciprocal): smoke check ---
    mean_loss_bf16 = MeanLossPallas(weight=1.0)
    total_bf16, loss_dict_bf16 = mean_loss_bf16.forward(embedded, classifier_dict)
    total_bf16 = jax.block_until_ready(total_bf16)
    assert np.isfinite(float(total_bf16))
    for name in classifier_dict:
        assert np.isfinite(loss_dict_bf16[name])
    np.testing.assert_allclose(float(total_bf16), ref_total, rtol=1e-1, atol=1e-1)

    print("KERNEL_OK")
</pallas_src>

<mosaic_0001>
module attributes {stable_mosaic.version = 11 : i64} {
  func.func @kernel(%arg0: memref<64x32xf32, #tpu.memory_space<vmem>>, %arg1: memref<32x16xf32, #tpu.memory_space<vmem>>, %arg2: memref<1x16xf32, #tpu.memory_space<vmem>>, %arg3: memref<1x2xf32, #tpu.memory_space<vmem>>, %arg4: memref<16x32xf32, #tpu.memory_space<vmem>>) attributes {dimension_semantics = [], scalar_prefetch = 0 : i64, scratch_operands = 0 : i64, tpu.core_type = #tpu.core_type<tc>} {
    %c0 = arith.constant 0 : index
    %c0_0 = arith.constant 0 : index
    %0 = vector.load %arg0[%c0, %c0_0] : memref<64x32xf32, #tpu.memory_space<vmem>>, vector<64x32xf32>
    %c0_1 = arith.constant 0 : index
    %c0_2 = arith.constant 0 : index
    %1 = vector.load %arg1[%c0_1, %c0_2] : memref<32x16xf32, #tpu.memory_space<vmem>>, vector<32x16xf32>
    %c0_3 = arith.constant 0 : index
    %c0_4 = arith.constant 0 : index
    %2 = vector.load %arg2[%c0_3, %c0_4] : memref<1x16xf32, #tpu.memory_space<vmem>>, vector<1x16xf32>
    %cst = arith.constant dense<0.000000e+00> : vector<64x16xf32>
    %3 = tpu.matmul %0, %1, %cst {dimension_numbers = #tpu.dot_dimension_numbers<[1], [0], [0], [1], [0, 0, 1, 1], [], []>} : vector<64x32xf32>, vector<32x16xf32>, vector<64x16xf32> -> vector<64x16xf32>
    %4 = vector.broadcast %2 : vector<1x16xf32> to vector<64x16xf32>
    %5 = arith.addf %3, %4 : vector<64x16xf32>
    %6 = vector.extract_strided_slice %5 {offsets = [0, 0], sizes = [64, 8], strides = [1, 1]} : vector<64x16xf32> to vector<64x8xf32>
    %cst_5 = arith.constant dense<0xFF800000> : vector<64xf32>
    %7 = vector.multi_reduction <maximumf>, %6, %cst_5 [1] : vector<64x8xf32> to vector<64xf32>
    %8 = vector.shape_cast %7 : vector<64xf32> to vector<64x1xf32>
    %9 = vector.broadcast %8 : vector<64x1xf32> to vector<64x8xf32>
    %10 = arith.subf %6, %9 : vector<64x8xf32>
    %11 = math.exp %10 : vector<64x8xf32>
    %cst_6 = arith.constant dense<0.000000e+00> : vector<64xf32>
    %12 = vector.multi_reduction <add>, %11, %cst_6 [1] : vector<64x8xf32> to vector<64xf32>
    %13 = vector.shape_cast %12 : vector<64xf32> to vector<64x1xf32>
    %14 = tpu.reciprocal %13 : vector<64x1xf32> -> vector<64x1xf32>
    %15 = vector.broadcast %14 : vector<64x1xf32> to vector<64x8xf32>
    %16 = arith.mulf %11, %15 : vector<64x8xf32>
    %17 = vector.extract_strided_slice %5 {offsets = [0, 8], sizes = [64, 8], strides = [1, 1]} : vector<64x16xf32> to vector<64x8xf32>
    %cst_7 = arith.constant dense<0xFF800000> : vector<64xf32>
    %18 = vector.multi_reduction <maximumf>, %17, %cst_7 [1] : vector<64x8xf32> to vector<64xf32>
    %19 = vector.shape_cast %18 : vector<64xf32> to vector<64x1xf32>
    %20 = vector.broadcast %19 : vector<64x1xf32> to vector<64x8xf32>
    %21 = arith.subf %17, %20 : vector<64x8xf32>
    %22 = math.exp %21 : vector<64x8xf32>
    %cst_8 = arith.constant dense<0.000000e+00> : vector<64xf32>
    %23 = vector.multi_reduction <add>, %22, %cst_8 [1] : vector<64x8xf32> to vector<64xf32>
    %24 = vector.shape_cast %23 : vector<64xf32> to vector<64x1xf32>
    %25 = tpu.reciprocal %24 : vector<64x1xf32> -> vector<64x1xf32>
    %26 = vector.broadcast %25 : vector<64x1xf32> to vector<64x8xf32>
    %27 = arith.mulf %22, %26 : vector<64x8xf32>
    %28 = tpu.concatenate %16, %27 in 1 : vector<64x8xf32>, vector<64x8xf32> -> vector<64x16xf32>
    %cst_9 = arith.constant dense<0.000000e+00> : vector<16x32xf32>
    %29 = tpu.matmul %28, %0, %cst_9 {dimension_numbers = #tpu.dot_dimension_numbers<[0], [0], [1], [1], [0, 1, 1, 1], [], []>} : vector<64x16xf32>, vector<64x32xf32>, vector<16x32xf32> -> vector<16x32xf32>
    %cst_10 = arith.constant 1.000000e+00 : f32
    %30 = vector.broadcast %cst_10 : f32 to vector<64x1xf32>
    %cst_11 = arith.constant dense<0.000000e+00> : vector<16x1xf32>
    %31 = tpu.matmul %28, %30, %cst_11 {dimension_numbers = #tpu.dot_dimension_numbers<[0], [0], [1], [1], [0, 1, 1, 1], [], []>} : vector<64x16xf32>, vector<64x1xf32>, vector<16x1xf32> -> vector<16x1xf32>
    %32 = tpu.reciprocal %31 : vector<16x1xf32> -> vector<16x1xf32>
    %33 = vector.broadcast %32 : vector<16x1xf32> to vector<16x32xf32>
    %34 = arith.mulf %29, %33 : vector<16x32xf32>
    %c0_12 = arith.constant 0 : index
    %c0_13 = arith.constant 0 : index
    %35 = vector.load %arg4[%c0_12, %c0_13] : memref<16x32xf32, #tpu.memory_space<vmem>>, vector<16x32xf32>
    tpu.vector_store %arg4[%c0_12, %c0_13], %34 {strides = array<i32>} : memref<16x32xf32, #tpu.memory_space<vmem>>, vector<16x32xf32>,
    %36 = arith.mulf %0, %0 : vector<64x32xf32>
    %cst_14 = arith.constant dense<0.000000e+00> : vector<64xf32>
    %37 = vector.multi_reduction <add>, %36, %cst_14 [1] : vector<64x32xf32> to vector<64xf32>
    %38 = vector.shape_cast %37 : vector<64xf32> to vector<64x1xf32>
    %cst_15 = arith.constant 1.000000e+00 : f32
    %39 = vector.broadcast %cst_15 : f32 to vector<1x32xf32>
    %40 = arith.mulf %34, %34 : vector<16x32xf32>
    %cst_16 = arith.constant dense<0.000000e+00> : vector<1x16xf32>
    %41 = tpu.matmul %39, %40, %cst_16 {dimension_numbers = #tpu.dot_dimension_numbers<[1], [1], [0], [0], [0, 0, 1, 0], [], []>} : vector<1x32xf32>, vector<16x32xf32>, vector<1x16xf32> -> vector<1x16xf32>
    %cst_17 = arith.constant dense<0.000000e+00> : vector<64x16xf32>
    %42 = tpu.matmul %0, %34, %cst_17 {dimension_numbers = #tpu.dot_dimension_numbers<[1], [1], [0], [0], [0, 0, 1, 0], [], []>} : vector<64x32xf32>, vector<16x32xf32>, vector<64x16xf32> -> vector<64x16xf32>
    %43 = vector.broadcast %38 : vector<64x1xf32> to vector<64x16xf32>
    %44 = vector.broadcast %41 : vector<1x16xf32> to vector<64x16xf32>
    %45 = arith.addf %43, %44 : vector<64x16xf32>
    %cst_18 = arith.constant 2.000000e+00 : f32
    %46 = vector.broadcast %cst_18 : f32 to vector<64x16xf32>
    %47 = arith.mulf %46, %42 : vector<64x16xf32>
    %48 = arith.subf %45, %47 : vector<64x16xf32>
    %cst_19 = arith.constant 0.000000e+00 : f32
    %49 = vector.broadcast %cst_19 : f32 to vector<64x16xf32>
    %50 = arith.maximumf %48, %49 : vector<64x16xf32>
    %51 = arith.mulf %28, %28 : vector<64x16xf32>
    %52 = arith.mulf %50, %51 : vector<64x16xf32>
    %cst_20 = arith.constant dense<0.000000e+00> : vector<16xf32>
    %53 = vector.multi_reduction <add>, %52, %cst_20 [0] : vector<64x16xf32> to vector<16xf32>
    %54 = vector.shape_cast %53 : vector<16xf32> to vector<1x16xf32>
    %55 = tpu.iota {dimensions = array<i32: 0>} : vector<16x2xi32>
    %56 = tpu.iota {dimensions = array<i32: 1>} : vector<16x2xi32>
    %c8_i32 = arith.constant 8 : i32
    %57 = vector.broadcast %c8_i32 : i32 to vector<16x2xi32>
    %58 = arith.muli %56, %57 : vector<16x2xi32>
    %59 = arith.cmpi sge, %55, %58 : vector<16x2xi32>
    %c1_i32 = arith.constant 1 : i32
    %60 = vector.broadcast %c1_i32 : i32 to vector<16x2xi32>
    %61 = arith.addi %56, %60 : vector<16x2xi32>
    %c8_i32_21 = arith.constant 8 : i32
    %62 = vector.broadcast %c8_i32_21 : i32 to vector<16x2xi32>
    %63 = arith.muli %61, %62 : vector<16x2xi32>
    %64 = arith.cmpi slt, %55, %63 : vector<16x2xi32>
    %65 = arith.andi %59, %64 : vector<16x2xi1>
    %66 = arith.extui %65 : vector<16x2xi1> to vector<16x2xi32>
    %67 = arith.sitofp %66 : vector<16x2xi32> to vector<16x2xf32>
    %cst_22 = arith.constant dense<0.000000e+00> : vector<1x2xf32>
    %68 = tpu.matmul %54, %67, %cst_22 {dimension_numbers = #tpu.dot_dimension_numbers<[1], [0], [0], [1], [0, 0, 1, 1], [], []>} : vector<1x16xf32>, vector<16x2xf32>, vector<1x2xf32> -> vector<1x2xf32>
    %cst_23 = arith.constant 1.562500e-02 : f32
    %69 = vector.broadcast %cst_23 : f32 to vector<1x2xf32>
    %70 = arith.mulf %68, %69 : vector<1x2xf32>
    %c0_24 = arith.constant 0 : index
    %c0_25 = arith.constant 0 : index
    %71 = vector.load %arg3[%c0_24, %c0_25] : memref<1x2xf32, #tpu.memory_space<vmem>>, vector<1x2xf32>
    tpu.vector_store %arg3[%c0_24, %c0_25], %70 {strides = array<i32>} : memref<1x2xf32, #tpu.memory_space<vmem>>, vector<1x2xf32>,
    return
  }
}

</mosaic_0001>

<llo_original>
// kernel: _mean_loss_fused.1
$region0: #{_mean_loss_fused.1}
  #allocation0 [shape = 'u32[]', space=smem, size = 0x4, offset = 0x4, fixed_abs, tag = 'smem constant byte address 0x4 - core index']
  #allocation1 [shape = 'u32[144,128]{1,0:T(1,128)}', space=vmem, size = 0x12000, scoped, tag = 'internal scratch']
  %s0 = inlined_call_operand.vmem [shape: f32[64,32], index: 0, kind: input, shape index: {}]
  %s1 = inlined_call_operand.vmem [shape: f32[32,16], index: 1, kind: input, shape index: {}]
  %s2 = inlined_call_operand.vmem [shape: f32[1,16], index: 2, kind: input, shape index: {}]
  %s3 = inlined_call_operand.hbm [shape: f32[1,2], index: 3, kind: output, shape index: {0}]
  %s4 = inlined_call_operand.hbm [shape: f32[16,32], index: 4, kind: output, shape index: {1}]
  %5 = xla_tuple %s3, %s4
  %s6 = sld [smem:[#allocation0]]
  $region30: #{_mean_loss_fused.1} parent=0
    _
  %s8 = ssub.s32 1, %s6
  %s9 = scalar_select 0, %s8, %s6
  $region1: #{_mean_loss_fused.1} parent=0
    #allocation2 [shape = 'u8[512]{0}', space=vmem, size = 0x400, scoped, tag = 'output window, operand 0, single buffered']
    #allocation3 [shape = 's32[1]{0}', space=sflag, size = 0x4, scoped, tag = 'scoped memory for _mean_loss_fused.1']
    #allocation4 [shape = 'u8[8192]{0}', space=vmem, size = 0x2000, scoped, tag = 'output window, operand 1, single buffered']
    #allocation5 [shape = 's32[1]{0}', space=sflag, size = 0x4, scoped, tag = 'scoped memory for _mean_loss_fused.1']
    %10 = vsyncpa [#allocation3], 0
    %11 = vsyncpa [#allocation5], 0
    // Predicated region
    $region2: #{_mean_loss_fused.1} parent=1 // pred_check
      _
    $region3: #{_mean_loss_fused.1} parent=1 // pred_check_branch
      %13 = sbr.rel (0) target = $region5
    $region4: #{_mean_loss_fused.1} parent=1 // pred_region
      _
    $region5: #{_mean_loss_fused.1} parent=1 // pred_fallthru
      _
    // Predicated region
    $region6: #{_mean_loss_fused.1} parent=1 // pred_check
      _
    $region7: #{_mean_loss_fused.1} parent=1 // pred_check_branch
      %15 = sbr.rel (0) target = $region9
    $region8: #{_mean_loss_fused.1} parent=1 // pred_region
      _
    $region9: #{_mean_loss_fused.1} parent=1 // pred_fallthru
      _
    // Predicated region
    $region10: #{_mean_loss_fused.1} parent=1 // pred_check
      _
    $region11: #{_mean_loss_fused.1} parent=1 // pred_check_branch
      %17 = sbr.rel (0) target = $region13
    $region12: #{_mean_loss_fused.1} parent=1 // pred_region
      _
    $region13: #{_mean_loss_fused.1} parent=1 // pred_fallthru
      _
    %v18 = vld [vmem:[%s0] sm:$0xff]
    %v19 = vld [vmem:[%s0 + $0x8] sm:$0xff]
    %v20 = vld [vmem:[%s0 + $0x10] sm:$0xff]
    %v21 = vld [vmem:[%s0 + $0x18] sm:$0xff]
    %v22 = vld [vmem:[%s0 + $0x20] sm:$0xff]
    %v23 = vld [vmem:[%s0 + $0x28] sm:$0xff]
    %v24 = vld [vmem:[%s0 + $0x30] sm:$0xff]
    %v25 = vld [vmem:[%s0 + $0x38] sm:$0xff]
    %v26 = vld [vmem:[%s1] sm:$0xff]
    %v27 = vld [vmem:[%s1 + $0x8] sm:$0xff]
    %v28 = vld [vmem:[%s1 + $0x10] sm:$0xff]
    %v29 = vld [vmem:[%s1 + $0x18] sm:$0xff]
    %v30 = vld [vmem:[%s2] sm:$0x1]
    %v32 = vlaneseq
    %v33 = vshrl.u32 %v32, 7
    %v34 = vsub.s32 0, %v33
    %v35 = vrot.slane %v30, %v34
    %vm37 = vcmask 261120
    %v39 = vsel %vm37, %v18, 0
    %v42 = vsel %vm37, %v19, 0
    %v45 = vsel %vm37, %v20, 0
    %v48 = vsel %vm37, %v21, 0
    %v51 = vsel %vm37, %v22, 0
    %v54 = vsel %vm37, %v23, 0
    %v57 = vsel %vm37, %v24, 0
    %v60 = vsel %vm37, %v25, 0
    %62 = vmatprep.subr.mxu0 0.0
    %63 = vmatpush1.msra.mxu0 0.0
    %64 = vmatprep.subr.mxu0 0.0
    %65 = vmatpush1.msra.mxu0 0.0
    %66 = vmatprep.subr.mxu0 0.0
    %67 = vmatpush1.msra.mxu0 0.0
    %68 = vmatprep.subr.mxu0 0.0
    %69 = vmatpush1.msra.mxu0 0.0
    %70 = vmatprep.subr.mxu0 0.0
    %71 = vmatpush1.msra.mxu0 0.0
    %72 = vmatprep.subr.mxu0 0.0
    %73 = vmatpush1.msra.mxu0 0.0
    %74 = vmatprep.subr.mxu0 0.0
    %75 = vmatpush1.msra.mxu0 0.0
    %76 = vmatprep.subr.mxu0 0.0
    %77 = vmatpush1.msra.mxu0 0.0
    %78 = vmatprep.subr.mxu0 0.0
    %79 = vmatpush1.msra.mxu0 0.0
    %80 = vmatprep.subr.mxu0 0.0
    %81 = vmatpush1.msra.mxu0 0.0
    %82 = vmatprep.subr.mxu0 0.0
    %83 = vmatpush1.msra.mxu0 0.0
    %84 = vmatprep.subr.mxu0 0.0
    %85 = vmatpush1.msra.mxu0 0.0
    %86 = vmatprep.subr.mxu0 0.0
    %87 = vmatpush1.msra.mxu0 %v29
    %88 = vmatprep.subr.mxu0 0.0
    %89 = vmatpush1.msra.mxu0 %v28
    %90 = vmatprep.subr.mxu0 0.0
    %91 = vmatpush1.msra.mxu0 %v27
    %92 = vmatprep.subr.mxu0 0.0
    %93 = vmatpush1.msra.mxu0 %v26
    %94 = vmatprep.subr.mxu0 0.0
    %95 = vmatpush2.msra.mxu0 0.0
    %96 = vmatprep.subr.mxu0 0.0
    %97 = vmatpush2.msra.mxu0 0.0
    %98 = vmatprep.subr.mxu0 0.0
    %99 = vmatpush2.msra.mxu0 0.0
    %100 = vmatprep.subr.mxu0 0.0
    %101 = vmatpush2.msra.mxu0 0.0
    %102 = vmatprep.subr.mxu0 0.0
    %103 = vmatpush2.msra.mxu0 0.0
    %104 = vmatprep.subr.mxu0 0.0
    %105 = vmatpush2.msra.mxu0 0.0
    %106 = vmatprep.subr.mxu0 0.0
    %107 = vmatpush2.msra.mxu0 0.0
    %108 = vmatprep.subr.mxu0 0.0
    %109 = vmatpush2.msra.mxu0 0.0
    %110 = vmatprep.subr.mxu0 0.0
    %111 = vmatpush2.msra.mxu0 0.0
    %112 = vmatprep.subr.mxu0 0.0
    %113 = vmatpush2.msra.mxu0 0.0
    %114 = vmatprep.subr.mxu0 0.0
    %115 = vmatpush2.msra.mxu0 0.0
    %116 = vmatprep.subr.mxu0 0.0
    %117 = vmatpush2.msra.mxu0 0.0
    %118 = vmatprep.subr.mxu0 0.0
    %119 = vmatpush2.msra.mxu0 0.0
    %120 = vmatprep.subr.mxu0 0.0
    %121 = vmatpush2.msra.mxu0 0.0
    %122 = vmatprep.subr.mxu0 0.0
    %123 = vmatpush2.msra.mxu0 0.0
    %124 = vmatprep.subr.mxu0 0.0
    %125 = vmatpush2.msra.mxu0 0.0
    %126 = vmatprep.mubr.f32.mxu0 0.0
    %127 = vmatmul.mubr.f32.gmra.mxu0 %v39
    %v128 = vpop.f32.mrf.mxu0
    %v129 = vadd.f32 %v35, %v128
    %v130 = vpop.f32.mrf.mxu0
    %131 = vmatprep.mubr.f32.mxu0 0.0
    %132 = vmatmul.mubr.f32.gmra.mxu0 %v42
    %v133 = vpop.f32.mrf.mxu0
    %v134 = vadd.f32 %v35, %v133
    %v135 = vpop.f32.mrf.mxu0
    %136 = vmatprep.mubr.f32.mxu0 0.0
    %137 = vmatmul.mubr.f32.gmra.mxu0 %v45
    %v138 = vpop.f32.mrf.mxu0
    %v139 = vadd.f32 %v35, %v138
    %v140 = vpop.f32.mrf.mxu0
    %141 = vmatprep.mubr.f32.mxu0 0.0
    %142 = vmatmul.mubr.f32.gmra.mxu0 %v48
    %v143 = vpop.f32.mrf.mxu0
    %v144 = vadd.f32 %v35, %v143
    %v145 = vpop.f32.mrf.mxu0
    %146 = vmatprep.mubr.f32.mxu0 0.0
    %147 = vmatmul.mubr.f32.gmra.mxu0 %v51
    %v148 = vpop.f32.mrf.mxu0
    %v149 = vadd.f32 %v35, %v148
    %v150 = vpop.f32.mrf.mxu0
    %151 = vmatprep.mubr.f32.mxu0 0.0
    %152 = vmatmul.mubr.f32.gmra.mxu0 %v54
    %v153 = vpop.f32.mrf.mxu0
    %v154 = vadd.f32 %v35, %v153
    %v155 = vpop.f32.mrf.mxu0
    %156 = vmatprep.mubr.f32.mxu0 0.0
    %157 = vmatmul.mubr.f32.gmra.mxu0 %v57
    %v158 = vpop.f32.mrf.mxu0
    %v159 = vadd.f32 %v35, %v158
    %v160 = vpop.f32.mrf.mxu0
    %161 = vmatprep.mubr.f32.mxu0 0.0
    %162 = vmatmul.mubr.f32.gmra.mxu0 %v60
    %v163 = vpop.f32.mrf.mxu0
    %v164 = vadd.f32 %v35, %v163
    %v165 = vpop.f32.mrf.mxu0
    %166 = vdwg.mxu0
    %vm167 = vcmask 64512
    %v168 = vsel %vm167, %v129, -inf
    %169 = vmax.xlane.f32.xlu0 %v168
    %v170 = vpop.xlane.xlu0 %169
    %v171 = vsel %vm167, %v134, -inf
    %172 = vmax.xlane.f32.xlu0 %v171
    %v173 = vpop.xlane.xlu0 %172
    %v174 = vsel %vm167, %v139, -inf
    %175 = vmax.xlane.f32.xlu0 %v174
    %v176 = vpop.xlane.xlu0 %175
    %v177 = vsel %vm167, %v144, -inf
    %178 = vmax.xlane.f32.xlu0 %v177
    %v179 = vpop.xlane.xlu0 %178
    %v180 = vsel %vm167, %v149, -inf
    %181 = vmax.xlane.f32.xlu0 %v180
    %v182 = vpop.xlane.xlu0 %181
    %v183 = vsel %vm167, %v154, -inf
    %184 = vmax.xlane.f32.xlu0 %v183
    %v185 = vpop.xlane.xlu0 %184
    %v186 = vsel %vm167, %v159, -inf
    %187 = vmax.xlane.f32.xlu0 %v186
    %v188 = vpop.xlane.xlu0 %187
    %v189 = vsel %vm167, %v164, -inf
    %190 = vmax.xlane.f32.xlu0 %v189
    %v191 = vpop.xlane.xlu0 %190
    %v192 = vsub.f32 %v129, %v170
    %v193 = vsub.f32 %v134, %v173
    %v194 = vsub.f32 %v139, %v176
    %v195 = vsub.f32 %v144, %v179
    %v196 = vsub.f32 %v149, %v182
    %v197 = vsub.f32 %v154, %v185
    %v198 = vsub.f32 %v159, %v188
    %v199 = vsub.f32 %v164, %v191
    %v200 = vmul.f32 %v192, 1.442695
    %v201 = vpow.pop %v200
    %v202 = vmul.f32 %v193, 1.442695
    %v203 = vpow.pop %v202
    %v204 = vmul.f32 %v194, 1.442695
    %v205 = vpow.pop %v204
    %v206 = vmul.f32 %v195, 1.442695
    %v207 = vpow.pop %v206
    %v208 = vmul.f32 %v196, 1.442695
    %v209 = vpow.pop %v208
    %v210 = vmul.f32 %v197, 1.442695
    %v211 = vpow.pop %v210
    %v212 = vmul.f32 %v198, 1.442695
    %v213 = vpow.pop %v212
    %v214 = vmul.f32 %v199, 1.442695
    %v215 = vpow.pop %v214
    %v216 = vsel %vm167, %v201, 0.0
    %217 = vadd.xlane.f32.xlu0 %v216
    %v218 = vpop.xlane.xlu0 %217
    %v219 = vsel %vm167, %v203, 0.0
    %220 = vadd.xlane.f32.xlu0 %v219
    %v221 = vpop.xlane.xlu0 %220
    %v222 = vsel %vm167, %v205, 0.0
    %223 = vadd.xlane.f32.xlu0 %v222
    %v224 = vpop.xlane.xlu0 %223
    %v225 = vsel %vm167, %v207, 0.0
    %226 = vadd.xlane.f32.xlu0 %v225
    %v227 = vpop.xlane.xlu0 %226
    %v228 = vsel %vm167, %v209, 0.0
    %229 = vadd.xlane.f32.xlu0 %v228
    %v230 = vpop.xlane.xlu0 %229
    %v231 = vsel %vm167, %v211, 0.0
    %232 = vadd.xlane.f32.xlu0 %v231
    %v233 = vpop.xlane.xlu0 %232
    %v234 = vsel %vm167, %v213, 0.0
    %235 = vadd.xlane.f32.xlu0 %v234
    %v236 = vpop.xlane.xlu0 %235
    %v237 = vsel %vm167, %v215, 0.0
    %238 = vadd.xlane.f32.xlu0 %v237
    %v239 = vpop.xlane.xlu0 %238
    %v240 = vrcp.pop %v218
    %v241 = vrcp.pop %v221
    %v242 = vrcp.pop %v224
    %v243 = vrcp.pop %v227
    %v244 = vrcp.pop %v230
    %v245 = vrcp.pop %v233
    %v246 = vrcp.pop %v236
    %v247 = vrcp.pop %v239
    %v248 = vmul.f32 %v201, %v240
    %v249 = vmul.f32 %v203, %v241
    %v250 = vmul.f32 %v205, %v242
    %v251 = vmul.f32 %v207, %v243
    %v252 = vmul.f32 %v209, %v244
    %v253 = vmul.f32 %v211, %v245
    %v254 = vmul.f32 %v213, %v246
    %v255 = vmul.f32 %v215, %v247
    %vm256 = vcmask 130112
    %v257 = vsel %vm256, %v129, -inf
    %258 = vmax.xlane.f32.xlu0 %v257
    %v259 = vpop.xlane.xlu0 %258
    %v260 = vsel %vm256, %v134, -inf
    %261 = vmax.xlane.f32.xlu0 %v260
    %v262 = vpop.xlane.xlu0 %261
    %v263 = vsel %vm256, %v139, -inf
    %264 = vmax.xlane.f32.xlu0 %v263
    %v265 = vpop.xlane.xlu0 %264
    %v266 = vsel %vm256, %v144, -inf
    %267 = vmax.xlane.f32.xlu0 %v266
    %v268 = vpop.xlane.xlu0 %267
    %v269 = vsel %vm256, %v149, -inf
    %270 = vmax.xlane.f32.xlu0 %v269
    %v271 = vpop.xlane.xlu0 %270
    %v272 = vsel %vm256, %v154, -inf
    %273 = vmax.xlane.f32.xlu0 %v272
    %v274 = vpop.xlane.xlu0 %273
    %v275 = vsel %vm256, %v159, -inf
    %276 = vmax.xlane.f32.xlu0 %v275
    %v277 = vpop.xlane.xlu0 %276
    %v278 = vsel %vm256, %v164, -inf
    %279 = vmax.xlane.f32.xlu0 %v278
    %v280 = vpop.xlane.xlu0 %279
    %v281 = vsub.f32 %v129, %v259
    %v282 = vsub.f32 %v134, %v262
    %v283 = vsub.f32 %v139, %v265
    %v284 = vsub.f32 %v144, %v268
    %v285 = vsub.f32 %v149, %v271
    %v286 = vsub.f32 %v154, %v274
    %v287 = vsub.f32 %v159, %v277
    %v288 = vsub.f32 %v164, %v280
    %v289 = vmul.f32 %v281, 1.442695
    %v290 = vpow.pop %v289
    %v291 = vmul.f32 %v282, 1.442695
    %v292 = vpow.pop %v291
    %v293 = vmul.f32 %v283, 1.442695
    %v294 = vpow.pop %v293
    %v295 = vmul.f32 %v284, 1.442695
    %v296 = vpow.pop %v295
    %v297 = vmul.f32 %v285, 1.442695
    %v298 = vpow.pop %v297
    %v299 = vmul.f32 %v286, 1.442695
    %v300 = vpow.pop %v299
    %v301 = vmul.f32 %v287, 1.442695
    %v302 = vpow.pop %v301
    %v303 = vmul.f32 %v288, 1.442695
    %v304 = vpow.pop %v303
    %313 = vrot.lane.b32.xlu0 %v290, 120
    %v314 = vpop.permute.xlu0 %313
    %315 = vrot.lane.b32.xlu0 %v292, 120
    %v316 = vpop.permute.xlu0 %315
    %317 = vrot.lane.b32.xlu0 %v294, 120
    %v318 = vpop.permute.xlu0 %317
    %319 = vrot.lane.b32.xlu0 %v296, 120
    %v320 = vpop.permute.xlu0 %319
    %321 = vrot.lane.b32.xlu0 %v298, 120
    %v322 = vpop.permute.xlu0 %321
    %323 = vrot.lane.b32.xlu0 %v300, 120
    %v324 = vpop.permute.xlu0 %323
    %325 = vrot.lane.b32.xlu0 %v302, 120
    %v326 = vpop.permute.xlu0 %325
    %327 = vrot.lane.b32.xlu0 %v304, 120
    %v328 = vpop.permute.xlu0 %327
    %v337 = vsel %vm167, %v314, 0.0
    %338 = vadd.xlane.f32.xlu0 %v337
    %v339 = vpop.xlane.xlu0 %338
    %v340 = vsel %vm167, %v316, 0.0
    %341 = vadd.xlane.f32.xlu0 %v340
    %v342 = vpop.xlane.xlu0 %341
    %v343 = vsel %vm167, %v318, 0.0
    %344 = vadd.xlane.f32.xlu0 %v343
    %v345 = vpop.xlane.xlu0 %344
    %v346 = vsel %vm167, %v320, 0.0
    %347 = vadd.xlane.f32.xlu0 %v346
    %v348 = vpop.xlane.xlu0 %347
    %v349 = vsel %vm167, %v322, 0.0
    %350 = vadd.xlane.f32.xlu0 %v349
    %v351 = vpop.xlane.xlu0 %350
    %v352 = vsel %vm167, %v324, 0.0
    %353 = vadd.xlane.f32.xlu0 %v352
    %v354 = vpop.xlane.xlu0 %353
    %v355 = vsel %vm167, %v326, 0.0
    %356 = vadd.xlane.f32.xlu0 %v355
    %v357 = vpop.xlane.xlu0 %356
    %v358 = vsel %vm167, %v328, 0.0
    %359 = vadd.xlane.f32.xlu0 %v358
    %v360 = vpop.xlane.xlu0 %359
    %v361 = vrcp.pop %v339
    %v362 = vrcp.pop %v342
    %v363 = vrcp.pop %v345
    %v364 = vrcp.pop %v348
    %v365 = vrcp.pop %v351
    %v366 = vrcp.pop %v354
    %v367 = vrcp.pop %v357
    %v368 = vrcp.pop %v360
    %v369 = vmul.f32 %v290, %v361
    %v370 = vmul.f32 %v292, %v362
    %v371 = vmul.f32 %v294, %v363
    %v372 = vmul.f32 %v296, %v364
    %v373 = vmul.f32 %v298, %v365
    %v374 = vmul.f32 %v300, %v366
    %v375 = vmul.f32 %v302, %v367
    %v376 = vmul.f32 %v304, %v368
    %v377 = vsel %vm167, %v248, %v369
    %v378 = vsel %vm167, %v249, %v370
    %v379 = vsel %vm167, %v250, %v371
    %v380 = vsel %vm167, %v251, %v372
    %v381 = vsel %vm167, %v252, %v373
    %v382 = vsel %vm167, %v253, %v374
    %v383 = vsel %vm167, %v254, %v375
    %v384 = vsel %vm167, %v255, %v376
    %385 = vxpose.xlu0.b32.start [1/16] %v377, 128
    %386 = vxpose.xlu0.b32.cont [2/16] %v378, 128
    %387 = vxpose.xlu0.b32.cont [3/16] %v379, 128
    %388 = vxpose.xlu0.b32.cont [4/16] %v380, 128
    %389 = vxpose.xlu0.b32.cont [5/16] %v381, 128
    %390 = vxpose.xlu0.b32.cont [6/16] %v382, 128
    %391 = vxpose.xlu0.b32.cont [7/16] %v383, 128
    %392 = vxpose.xlu0.b32.cont [8/16] %v384, 128
    %393 = vxpose.xlu0.b32.cont [9/16] 0.0, 128
    %394 = vxpose.xlu0.b32.cont [10/16] 0.0, 128
    %395 = vxpose.xlu0.b32.cont [11/16] 0.0, 128
    %396 = vxpose.xlu0.b32.cont [12/16] 0.0, 128
    %397 = vxpose.xlu0.b32.cont [13/16] 0.0, 128
    %398 = vxpose.xlu0.b32.cont [14/16] 0.0, 128
    %399 = vxpose.xlu0.b32.cont [15/16] 0.0, 128
    %400 = vxpose.xlu0.b32.end [16/16] 0.0, 128
    %v401 = vpop.trf.xlu0
    %v402 = vpop.trf.xlu0
    %v403 = vpop.trf.xlu0
    %v404 = vpop.trf.xlu0
    %v405 = vpop.trf.xlu0
    %v406 = vpop.trf.xlu0
    %v407 = vpop.trf.xlu0
    %v408 = vpop.trf.xlu0
    %v409 = vpop.trf.xlu0
    %v410 = vpop.trf.xlu0
    %v411 = vpop.trf.xlu0
    %v412 = vpop.trf.xlu0
    %v413 = vpop.trf.xlu0
    %v414 = vpop.trf.xlu0
    %v415 = vpop.trf.xlu0
    %v416 = vpop.trf.xlu0
    %vm417 = vcmask 523264
    %v419 = vsel %vm417, %v401, 0
    %v422 = vsel %vm417, %v402, 0
    %424 = vmatprep.subr.mxu0 0.0
    %425 = vmatpush1.msra.mxu0 0.0
    %426 = vmatprep.subr.mxu0 0.0
    %427 = vmatpush1.msra.mxu0 0.0
    %428 = vmatprep.subr.mxu0 0.0
    %429 = vmatpush1.msra.mxu0 0.0
    %430 = vmatprep.subr.mxu0 0.0
    %431 = vmatpush1.msra.mxu0 0.0
    %432 = vmatprep.subr.mxu0 0.0
    %433 = vmatpush1.msra.mxu0 0.0
    %434 = vmatprep.subr.mxu0 0.0
    %435 = vmatpush1.msra.mxu0 0.0
    %436 = vmatprep.subr.mxu0 0.0
    %437 = vmatpush1.msra.mxu0 0.0
    %438 = vmatprep.subr.mxu0 0.0
    %439 = vmatpush1.msra.mxu0 0.0
    %440 = vmatprep.subr.mxu0 0.0
    %441 = vmatpush1.msra.mxu0 %v25
    %442 = vmatprep.subr.mxu0 0.0
    %443 = vmatpush1.msra.mxu0 %v24
    %444 = vmatprep.subr.mxu0 0.0
    %445 = vmatpush1.msra.mxu0 %v23
    %446 = vmatprep.subr.mxu0 0.0
    %447 = vmatpush1.msra.mxu0 %v22
    %448 = vmatprep.subr.mxu0 0.0
    %449 = vmatpush1.msra.mxu0 %v21
    %450 = vmatprep.subr.mxu0 0.0
    %451 = vmatpush1.msra.mxu0 %v20
    %452 = vmatprep.subr.mxu0 0.0
    %453 = vmatpush1.msra.mxu0 %v19
    %454 = vmatprep.subr.mxu0 0.0
    %455 = vmatpush1.msra.mxu0 %v18
    %456 = vmatprep.subr.mxu0 0.0
    %457 = vmatpush2.msra.mxu0 0.0
    %458 = vmatprep.subr.mxu0 0.0
    %459 = vmatpush2.msra.mxu0 0.0
    %460 = vmatprep.subr.mxu0 0.0
    %461 = vmatpush2.msra.mxu0 0.0
    %462 = vmatprep.subr.mxu0 0.0
    %463 = vmatpush2.msra.mxu0 0.0
    %464 = vmatprep.subr.mxu0 0.0
    %465 = vmatpush2.msra.mxu0 0.0
    %466 = vmatprep.subr.mxu0 0.0
    %467 = vmatpush2.msra.mxu0 0.0
    %468 = vmatprep.subr.mxu0 0.0
    %469 = vmatpush2.msra.mxu0 0.0
    %470 = vmatprep.subr.mxu0 0.0
    %471 = vmatpush2.msra.mxu0 0.0
    %472 = vmatprep.subr.mxu0 0.0
    %473 = vmatpush2.msra.mxu0 0.0
    %474 = vmatprep.subr.mxu0 0.0
    %475 = vmatpush2.msra.mxu0 0.0
    %476 = vmatprep.subr.mxu0 0.0
    %477 = vmatpush2.msra.mxu0 0.0
    %478 = vmatprep.subr.mxu0 0.0
    %479 = vmatpush2.msra.mxu0 0.0
    %480 = vmatprep.subr.mxu0 0.0
    %481 = vmatpush2.msra.mxu0 0.0
    %482 = vmatprep.subr.mxu0 0.0
    %483 = vmatpush2.msra.mxu0 0.0
    %484 = vmatprep.subr.mxu0 0.0
    %485 = vmatpush2.msra.mxu0 0.0
    %486 = vmatprep.subr.mxu0 0.0
    %487 = vmatpush2.msra.mxu0 0.0
    %488 = vmatprep.mubr.f32.mxu0 0.0
    %489 = vmatmul.mubr.f32.gmra.mxu0 %v419
    %v490 = vpop.f32.mrf.mxu0
    %v491 = vadd.f32 0.0, %v490
    %v492 = vpop.f32.mrf.mxu0
    %493 = vmatprep.mubr.f32.mxu0 0.0
    %494 = vmatmul.mubr.f32.gmra.mxu0 %v422
    %v495 = vpop.f32.mrf.mxu0
    %v496 = vadd.f32 0.0, %v495
    %v497 = vpop.f32.mrf.mxu0
    %498 = vdwg.mxu0
    %499 = vmatprep.subr.mxu0 0.0
    %500 = vmatpush1.msra.mxu0 0.0
    %501 = vmatprep.subr.mxu0 0.0
    %502 = vmatpush1.msra.mxu0 0.0
    %503 = vmatprep.subr.mxu0 0.0
    %504 = vmatpush1.msra.mxu0 0.0
    %505 = vmatprep.subr.mxu0 0.0
    %506 = vmatpush1.msra.mxu0 0.0
    %507 = vmatprep.subr.mxu0 0.0
    %508 = vmatpush1.msra.mxu0 0.0
    %509 = vmatprep.subr.mxu0 0.0
    %510 = vmatpush1.msra.mxu0 0.0
    %511 = vmatprep.subr.mxu0 0.0
    %512 = vmatpush1.msra.mxu0 0.0
    %513 = vmatprep.subr.mxu0 0.0
    %514 = vmatpush1.msra.mxu0 0.0
    %515 = vmatprep.subr.mxu0 0.0
    %516 = vmatpush1.msra.mxu0 1.0
    %517 = vmatprep.subr.mxu0 0.0
    %518 = vmatpush1.msra.mxu0 1.0
    %519 = vmatprep.subr.mxu0 0.0
    %520 = vmatpush1.msra.mxu0 1.0
    %521 = vmatprep.subr.mxu0 0.0
    %522 = vmatpush1.msra.mxu0 1.0
    %523 = vmatprep.subr.mxu0 0.0
    %524 = vmatpush1.msra.mxu0 1.0
    %525 = vmatprep.subr.mxu0 0.0
    %526 = vmatpush1.msra.mxu0 1.0
    %527 = vmatprep.subr.mxu0 0.0
    %528 = vmatpush1.msra.mxu0 1.0
    %529 = vmatprep.subr.mxu0 0.0
    %530 = vmatpush1.msra.mxu0 1.0
    %531 = vmatprep.subr.mxu0 0.0
    %532 = vmatpush2.msra.mxu0 0.0
    %533 = vmatprep.subr.mxu0 0.0
    %534 = vmatpush2.msra.mxu0 0.0
    %535 = vmatprep.subr.mxu0 0.0
    %536 = vmatpush2.msra.mxu0 0.0
    %537 = vmatprep.subr.mxu0 0.0
    %538 = vmatpush2.msra.mxu0 0.0
    %539 = vmatprep.subr.mxu0 0.0
    %540 = vmatpush2.msra.mxu0 0.0
    %541 = vmatprep.subr.mxu0 0.0
    %542 = vmatpush2.msra.mxu0 0.0
    %543 = vmatprep.subr.mxu0 0.0
    %544 = vmatpush2.msra.mxu0 0.0
    %545 = vmatprep.subr.mxu0 0.0
    %546 = vmatpush2.msra.mxu0 0.0
    %547 = vmatprep.subr.mxu0 0.0
    %548 = vmatpush2.msra.mxu0 0.0
    %549 = vmatprep.subr.mxu0 0.0
    %550 = vmatpush2.msra.mxu0 0.0
    %551 = vmatprep.subr.mxu0 0.0
    %552 = vmatpush2.msra.mxu0 0.0
    %553 = vmatprep.subr.mxu0 0.0
    %554 = vmatpush2.msra.mxu0 0.0
    %555 = vmatprep.subr.mxu0 0.0
    %556 = vmatpush2.msra.mxu0 0.0
    %557 = vmatprep.subr.mxu0 0.0
    %558 = vmatpush2.msra.mxu0 0.0
    %559 = vmatprep.subr.mxu0 0.0
    %560 = vmatpush2.msra.mxu0 0.0
    %561 = vmatprep.subr.mxu0 0.0
    %562 = vmatpush2.msra.mxu0 0.0
    %563 = vmatprep.mubr.f32.mxu0 0.0
    %564 = vmatmul.mubr.f32.gmra.mxu0 %v419
    %v565 = vpop.f32.mrf.mxu0
    %v566 = vadd.f32 0.0, %v565
    %v567 = vpop.f32.mrf.mxu0
    %568 = vmatprep.mubr.f32.mxu0 0.0
    %569 = vmatmul.mubr.f32.gmra.mxu0 %v422
    %v570 = vpop.f32.mrf.mxu0
    %v571 = vadd.f32 0.0, %v570
    %v572 = vpop.f32.mrf.mxu0
    %573 = vdwg.mxu0
    %v574 = vrcp.pop %v566
    %v575 = vrcp.pop %v571
    %577 = vset.pattern.permute.xlu0 0
    %578 = vperm.xlu0 %577, %v574
    %v579 = vpop.permute.xlu0 %578
    %582 = vset.pattern.permute.xlu0 0
    %583 = vperm.xlu0 %582, %v575
    %v584 = vpop.permute.xlu0 %583
    %v586 = vmul.f32 %v491, %v579
    %v587 = vmul.f32 %v496, %v584
    %588 = vst.msk [vmem:[#allocation4] sm:$0xff] %vm37, %v586
    %589 = vst.msk [vmem:[#allocation4 + $0x8] sm:$0xff] %vm37, %v587
    %v590 = vmul.f32 %v18, %v18
    %v591 = vmul.f32 %v19, %v19
    %v592 = vmul.f32 %v20, %v20
    %v593 = vmul.f32 %v21, %v21
    %v594 = vmul.f32 %v22, %v22
    %v595 = vmul.f32 %v23, %v23
    %v596 = vmul.f32 %v24, %v24
    %v597 = vmul.f32 %v25, %v25
    %v598 = vsel %vm37, %v590, 0.0
    %599 = vadd.xlane.f32.xlu0 %v598
    %v600 = vpop.xlane.xlu0 %599
    %v601 = vsel %vm37, %v591, 0.0
    %602 = vadd.xlane.f32.xlu0 %v601
    %v603 = vpop.xlane.xlu0 %602
    %v604 = vsel %vm37, %v592, 0.0
    %605 = vadd.xlane.f32.xlu0 %v604
    %v606 = vpop.xlane.xlu0 %605
    %v607 = vsel %vm37, %v593, 0.0
    %608 = vadd.xlane.f32.xlu0 %v607
    %v609 = vpop.xlane.xlu0 %608
    %v610 = vsel %vm37, %v594, 0.0
    %611 = vadd.xlane.f32.xlu0 %v610
    %v612 = vpop.xlane.xlu0 %611
    %v613 = vsel %vm37, %v595, 0.0
    %614 = vadd.xlane.f32.xlu0 %v613
    %v615 = vpop.xlane.xlu0 %614
    %v616 = vsel %vm37, %v596, 0.0
    %617 = vadd.xlane.f32.xlu0 %v616
    %v618 = vpop.xlane.xlu0 %617
    %v619 = vsel %vm37, %v597, 0.0
    %620 = vadd.xlane.f32.xlu0 %v619
    %v621 = vpop.xlane.xlu0 %620
    %v622 = vmul.f32 %v586, %v586
    %v623 = vmul.f32 %v587, %v587
    %v625 = vsel %vm37, 1.0, 0
    %v628 = vsel %vm37, %v622, 0
    %v631 = vsel %vm37, %v623, 0
    %633 = vmatprep.subr.mxu0 0.0
    %634 = vmatpush1.xpose.msra.mxu0 0.0
    %635 = vmatprep.subr.mxu0 0.0
    %636 = vmatpush1.xpose.msra.mxu0 0.0
    %637 = vmatprep.subr.mxu0 0.0
    %638 = vmatpush1.xpose.msra.mxu0 0.0
    %639 = vmatprep.subr.mxu0 0.0
    %640 = vmatpush1.xpose.msra.mxu0 0.0
    %641 = vmatprep.subr.mxu0 0.0
    %642 = vmatpush1.xpose.msra.mxu0 0.0
    %643 = vmatprep.subr.mxu0 0.0
    %644 = vmatpush1.xpose.msra.mxu0 0.0
    %645 = vmatprep.subr.mxu0 0.0
    %646 = vmatpush1.xpose.msra.mxu0 0.0
    %647 = vmatprep.subr.mxu0 0.0
    %648 = vmatpush1.xpose.msra.mxu0 0.0
    %649 = vmatprep.subr.mxu0 0.0
    %650 = vmatpush1.xpose.msra.mxu0 0.0
    %651 = vmatprep.subr.mxu0 0.0
    %652 = vmatpush1.xpose.msra.mxu0 0.0
    %653 = vmatprep.subr.mxu0 0.0
    %654 = vmatpush1.xpose.msra.mxu0 0.0
    %655 = vmatprep.subr.mxu0 0.0
    %656 = vmatpush1.xpose.msra.mxu0 0.0
    %657 = vmatprep.subr.mxu0 0.0
    %658 = vmatpush1.xpose.msra.mxu0 0.0
    %659 = vmatprep.subr.mxu0 0.0
    %660 = vmatpush1.xpose.msra.mxu0 0.0
    %661 = vmatprep.subr.mxu0 0.0
    %662 = vmatpush1.xpose.msra.mxu0 %v631
    %663 = vmatprep.subr.mxu0 0.0
    %664 = vmatpush1.xpose.msra.mxu0 %v628
    %665 = vmatprep.subr.mxu0 0.0
    %666 = vmatpush2.xpose.msra.mxu0 0.0
    %667 = vmatprep.subr.mxu0 0.0
    %668 = vmatpush2.xpose.msra.mxu0 0.0
    %669 = vmatprep.subr.mxu0 0.0
    %670 = vmatpush2.xpose.msra.mxu0 0.0
    %671 = vmatprep.subr.mxu0 0.0
    %672 = vmatpush2.xpose.msra.mxu0 0.0
    %673 = vmatprep.subr.mxu0 0.0
    %674 = vmatpush2.xpose.msra.mxu0 0.0
    %675 = vmatprep.subr.mxu0 0.0
    %676 = vmatpush2.xpose.msra.mxu0 0.0
    %677 = vmatprep.subr.mxu0 0.0
    %678 = vmatpush2.xpose.msra.mxu0 0.0
    %679 = vmatprep.subr.mxu0 0.0
    %680 = vmatpush2.xpose.msra.mxu0 0.0
    %681 = vmatprep.subr.mxu0 0.0
    %682 = vmatpush2.xpose.msra.mxu0 0.0
    %683 = vmatprep.subr.mxu0 0.0
    %684 = vmatpush2.xpose.msra.mxu0 0.0
    %685 = vmatprep.subr.mxu0 0.0
    %686 = vmatpush2.xpose.msra.mxu0 0.0
    %687 = vmatprep.subr.mxu0 0.0
    %688 = vmatpush2.xpose.msra.mxu0 0.0
    %689 = vmatprep.subr.mxu0 0.0
    %690 = vmatpush2.xpose.msra.mxu0 0.0
    %691 = vmatprep.subr.mxu0 0.0
    %692 = vmatpush2.xpose.msra.mxu0 0.0
    %693 = vmatprep.subr.mxu0 0.0
    %694 = vmatpush2.xpose.msra.mxu0 0.0
    %695 = vmatprep.subr.mxu0 0.0
    %696 = vmatpush2.xpose.msra.mxu0 0.0
    %697 = vmatprep.mubr.f32.mxu0 0.0
    %698 = vmatmul.mubr.f32.gmra.mxu0 %v625
    %v699 = vpop.f32.mrf.mxu0
    %v700 = vadd.f32 0.0, %v699
    %v701 = vpop.f32.mrf.mxu0
    %702 = vdwg.mxu0
    %v704 = vsel %vm37, %v586, 0
    %v707 = vsel %vm37, %v587, 0
    %709 = vmatprep.subr.mxu0 0.0
    %710 = vmatpush1.xpose.msra.mxu0 0.0
    %711 = vmatprep.subr.mxu0 0.0
    %712 = vmatpush1.xpose.msra.mxu0 0.0
    %713 = vmatprep.subr.mxu0 0.0
    %714 = vmatpush1.xpose.msra.mxu0 0.0
    %715 = vmatprep.subr.mxu0 0.0
    %716 = vmatpush1.xpose.msra.mxu0 0.0
    %717 = vmatprep.subr.mxu0 0.0
    %718 = vmatpush1.xpose.msra.mxu0 0.0
    %719 = vmatprep.subr.mxu0 0.0
    %720 = vmatpush1.xpose.msra.mxu0 0.0
    %721 = vmatprep.subr.mxu0 0.0
    %722 = vmatpush1.xpose.msra.mxu0 0.0
    %723 = vmatprep.subr.mxu0 0.0
    %724 = vmatpush1.xpose.msra.mxu0 0.0
    %725 = vmatprep.subr.mxu0 0.0
    %726 = vmatpush1.xpose.msra.mxu0 0.0
    %727 = vmatprep.subr.mxu0 0.0
    %728 = vmatpush1.xpose.msra.mxu0 0.0
    %729 = vmatprep.subr.mxu0 0.0
    %730 = vmatpush1.xpose.msra.mxu0 0.0
    %731 = vmatprep.subr.mxu0 0.0
    %732 = vmatpush1.xpose.msra.mxu0 0.0
    %733 = vmatprep.subr.mxu0 0.0
    %734 = vmatpush1.xpose.msra.mxu0 0.0
    %735 = vmatprep.subr.mxu0 0.0
    %736 = vmatpush1.xpose.msra.mxu0 0.0
    %737 = vmatprep.subr.mxu0 0.0
    %738 = vmatpush1.xpose.msra.mxu0 %v707
    %739 = vmatprep.subr.mxu0 0.0
    %740 = vmatpush1.xpose.msra.mxu0 %v704
    %741 = vmatprep.subr.mxu0 0.0
    %742 = vmatpush2.xpose.msra.mxu0 0.0
    %743 = vmatprep.subr.mxu0 0.0
    %744 = vmatpush2.xpose.msra.mxu0 0.0
    %745 = vmatprep.subr.mxu0 0.0
    %746 = vmatpush2.xpose.msra.mxu0 0.0
    %747 = vmatprep.subr.mxu0 0.0
    %748 = vmatpush2.xpose.msra.mxu0 0.0
    %749 = vmatprep.subr.mxu0 0.0
    %750 = vmatpush2.xpose.msra.mxu0 0.0
    %751 = vmatprep.subr.mxu0 0.0
    %752 = vmatpush2.xpose.msra.mxu0 0.0
    %753 = vmatprep.subr.mxu0 0.0
    %754 = vmatpush2.xpose.msra.mxu0 0.0
    %755 = vmatprep.subr.mxu0 0.0
    %756 = vmatpush2.xpose.msra.mxu0 0.0
    %757 = vmatprep.subr.mxu0 0.0
    %758 = vmatpush2.xpose.msra.mxu0 0.0
    %759 = vmatprep.subr.mxu0 0.0
    %760 = vmatpush2.xpose.msra.mxu0 0.0
    %761 = vmatprep.subr.mxu0 0.0
    %762 = vmatpush2.xpose.msra.mxu0 0.0
    %763 = vmatprep.subr.mxu0 0.0
    %764 = vmatpush2.xpose.msra.mxu0 0.0
    %765 = vmatprep.subr.mxu0 0.0
    %766 = vmatpush2.xpose.msra.mxu0 0.0
    %767 = vmatprep.subr.mxu0 0.0
    %768 = vmatpush2.xpose.msra.mxu0 0.0
    %769 = vmatprep.subr.mxu0 0.0
    %770 = vmatpush2.xpose.msra.mxu0 0.0
    %771 = vmatprep.subr.mxu0 0.0
    %772 = vmatpush2.xpose.msra.mxu0 0.0
    %773 = vmatprep.mubr.f32.mxu0 0.0
    %774 = vmatmul.mubr.f32.gmra.mxu0 %v39
    %v775 = vpop.f32.mrf.mxu0
    %v776 = vadd.f32 0.0, %v775
    %v777 = vpop.f32.mrf.mxu0
    %778 = vmatprep.mubr.f32.mxu0 0.0
    %779 = vmatmul.mubr.f32.gmra.mxu0 %v42
    %v780 = vpop.f32.mrf.mxu0
    %v781 = vadd.f32 0.0, %v780
    %v782 = vpop.f32.mrf.mxu0
    %783 = vmatprep.mubr.f32.mxu0 0.0
    %784 = vmatmul.mubr.f32.gmra.mxu0 %v45
    %v785 = vpop.f32.mrf.mxu0
    %v786 = vadd.f32 0.0, %v785
    %v787 = vpop.f32.mrf.mxu0
    %788 = vmatprep.mubr.f32.mxu0 0.0
    %789 = vmatmul.mubr.f32.gmra.mxu0 %v48
    %v790 = vpop.f32.mrf.mxu0
    %v791 = vadd.f32 0.0, %v790
    %v792 = vpop.f32.mrf.mxu0
    %793 = vmatprep.mubr.f32.mxu0 0.0
    %794 = vmatmul.mubr.f32.gmra.mxu0 %v51
    %v795 = vpop.f32.mrf.mxu0
    %v796 = vadd.f32 0.0, %v795
    %v797 = vpop.f32.mrf.mxu0
    %798 = vmatprep.mubr.f32.mxu0 0.0
    %799 = vmatmul.mubr.f32.gmra.mxu0 %v54
    %v800 = vpop.f32.mrf.mxu0
    %v801 = vadd.f32 0.0, %v800
    %v802 = vpop.f32.mrf.mxu0
    %803 = vmatprep.mubr.f32.mxu0 0.0
    %804 = vmatmul.mubr.f32.gmra.mxu0 %v57
    %v805 = vpop.f32.mrf.mxu0
    %v806 = vadd.f32 0.0, %v805
    %v807 = vpop.f32.mrf.mxu0
    %808 = vmatprep.mubr.f32.mxu0 0.0
    %809 = vmatmul.mubr.f32.gmra.mxu0 %v60
    %v810 = vpop.f32.mrf.mxu0
    %v811 = vadd.f32 0.0, %v810
    %v812 = vpop.f32.mrf.mxu0
    %813 = vdwg.mxu0
    %v814 = vlaneseq
    %v815 = vshrl.u32 %v814, 7
    %v816 = vsub.s32 0, %v815
    %v817 = vrot.slane %v700, %v816
    %v818 = vadd.f32 %v600, %v817
    %v819 = vadd.f32 %v603, %v817
    %v820 = vadd.f32 %v606, %v817
    %v821 = vadd.f32 %v609, %v817
    %v822 = vadd.f32 %v612, %v817
    %v823 = vadd.f32 %v615, %v817
    %v824 = vadd.f32 %v618, %v817
    %v825 = vadd.f32 %v621, %v817
    %v826 = vmul.f32 %v776, 2.0
    %v827 = vmul.f32 %v781, 2.0
    %v828 = vmul.f32 %v786, 2.0
    %v829 = vmul.f32 %v791, 2.0
    %v830 = vmul.f32 %v796, 2.0
    %v831 = vmul.f32 %v801, 2.0
    %v832 = vmul.f32 %v806, 2.0
    %v833 = vmul.f32 %v811, 2.0
    %v834 = vsub.f32 %v818, %v826
    %v835 = vsub.f32 %v819, %v827
    %v836 = vsub.f32 %v820, %v828
    %v837 = vsub.f32 %v821, %v829
    %v838 = vsub.f32 %v822, %v830
    %v839 = vsub.f32 %v823, %v831
    %v840 = vsub.f32 %v824, %v832
    %v841 = vsub.f32 %v825, %v833
    %v842 = vmax.f32 %v834, 0.0
    %v843 = vmax.f32 %v835, 0.0
    %v844 = vmax.f32 %v836, 0.0
    %v845 = vmax.f32 %v837, 0.0
    %v846 = vmax.f32 %v838, 0.0
    %v847 = vmax.f32 %v839, 0.0
    %v848 = vmax.f32 %v840, 0.0
    %v849 = vmax.f32 %v841, 0.0
    %v850 = vmul.f32 %v377, %v377
    %v851 = vmul.f32 %v378, %v378
    %v852 = vmul.f32 %v379, %v379
    %v853 = vmul.f32 %v380, %v380
    %v854 = vmul.f32 %v381, %v381
    %v855 = vmul.f32 %v382, %v382
    %v856 = vmul.f32 %v383, %v383
    %v857 = vmul.f32 %v384, %v384
    %v858 = vmul.f32 %v842, %v850
    %v859 = vmul.f32 %v843, %v851
    %v860 = vmul.f32 %v844, %v852
    %v861 = vmul.f32 %v845, %v853
    %v862 = vmul.f32 %v846, %v854
    %v863 = vmul.f32 %v847, %v855
    %v864 = vmul.f32 %v848, %v856
    %v865 = vmul.f32 %v849, %v857
    %vm866 = vcmask 130048
    %v867 = vsel %vm866, %v858, 0.0
    %v868 = vsel %vm866, %v859, 0.0
    %v869 = vadd.f32 %v867, %v868
    %v870 = vsel %vm866, %v860, 0.0
    %v871 = vadd.f32 %v869, %v870
    %v872 = vsel %vm866, %v861, 0.0
    %v873 = vadd.f32 %v871, %v872
    %v874 = vsel %vm866, %v862, 0.0
    %v875 = vadd.f32 %v873, %v874
    %v876 = vsel %vm866, %v863, 0.0
    %v877 = vadd.f32 %v875, %v876
    %v878 = vsel %vm866, %v864, 0.0
    %v879 = vadd.f32 %v877, %v878
    %v880 = vsel %vm866, %v865, 0.0
    %v881 = vadd.f32 %v879, %v880
    %v882 = vrot.slane %v881, 4
    %v883 = vadd.f32 %v881, %v882
    %v884 = vrot.slane %v883, 2
    %v885 = vadd.f32 %v883, %v884
    %v886 = vrot.slane %v885, 1
    %v887 = vadd.f32 %v885, %v886
    %v888 = vlaneseq
    %v889 = vshrl.u32 %v888, 7
    %v890 = vadd.s32 %v889, 8
    %v891 = vlaneseq
    %v892 = vand.u32 %v891, 127
    %v893 = vmul.u32 %v892, 8
    %vm894 = vcmp.ge.s32.totalorder %v889, %v893
    %vm895 = vcmp.ge.s32.totalorder %v890, %v893
    %v896 = vadd.s32 %v892, 1
    %v897 = vmul.u32 %v896, 8
    %vm898 = vcmp.lt.s32.totalorder %v889, %v897
    %vm899 = vcmp.lt.s32.totalorder %v890, %v897
    %vm900 = vmand %vm894, %vm898
    %vm901 = vmand %vm895, %vm899
    %v902 = vsel %vm900, 1, 0
    %v903 = vsel %vm901, 1, 0
    %v904 = vcvt.s32.f32 %v902
    %v905 = vcvt.s32.f32 %v903
    %v907 = vsel %vm866, %v887, 0
    %909 = vmatprep.subr.mxu0 0.0
    %910 = vmatpush1.msra.mxu0 0.0
    %911 = vmatprep.subr.mxu0 0.0
    %912 = vmatpush1.msra.mxu0 0.0
    %913 = vmatprep.subr.mxu0 0.0
    %914 = vmatpush1.msra.mxu0 0.0
    %915 = vmatprep.subr.mxu0 0.0
    %916 = vmatpush1.msra.mxu0 0.0
    %917 = vmatprep.subr.mxu0 0.0
    %918 = vmatpush1.msra.mxu0 0.0
    %919 = vmatprep.subr.mxu0 0.0
    %920 = vmatpush1.msra.mxu0 0.0
    %921 = vmatprep.subr.mxu0 0.0
    %922 = vmatpush1.msra.mxu0 0.0
    %923 = vmatprep.subr.mxu0 0.0
    %924 = vmatpush1.msra.mxu0 0.0
    %925 = vmatprep.subr.mxu0 0.0
    %926 = vmatpush1.msra.mxu0 0.0
    %927 = vmatprep.subr.mxu0 0.0
    %928 = vmatpush1.msra.mxu0 0.0
    %929 = vmatprep.subr.mxu0 0.0
    %930 = vmatpush1.msra.mxu0 0.0
    %931 = vmatprep.subr.mxu0 0.0
    %932 = vmatpush1.msra.mxu0 0.0
    %933 = vmatprep.subr.mxu0 0.0
    %934 = vmatpush1.msra.mxu0 0.0
    %935 = vmatprep.subr.mxu0 0.0
    %936 = vmatpush1.msra.mxu0 0.0
    %937 = vmatprep.subr.mxu0 0.0
    %938 = vmatpush1.msra.mxu0 %v905
    %939 = vmatprep.subr.mxu0 0.0
    %940 = vmatpush1.msra.mxu0 %v904
    %941 = vmatprep.subr.mxu0 0.0
    %942 = vmatpush2.msra.mxu0 0.0
    %943 = vmatprep.subr.mxu0 0.0
    %944 = vmatpush2.msra.mxu0 0.0
    %945 = vmatprep.subr.mxu0 0.0
    %946 = vmatpush2.msra.mxu0 0.0
    %947 = vmatprep.subr.mxu0 0.0
    %948 = vmatpush2.msra.mxu0 0.0
    %949 = vmatprep.subr.mxu0 0.0
    %950 = vmatpush2.msra.mxu0 0.0
    %951 = vmatprep.subr.mxu0 0.0
    %952 = vmatpush2.msra.mxu0 0.0
    %953 = vmatprep.subr.mxu0 0.0
    %954 = vmatpush2.msra.mxu0 0.0
    %955 = vmatprep.subr.mxu0 0.0
    %956 = vmatpush2.msra.mxu0 0.0
    %957 = vmatprep.subr.mxu0 0.0
    %958 = vmatpush2.msra.mxu0 0.0
    %959 = vmatprep.subr.mxu0 0.0
    %960 = vmatpush2.msra.mxu0 0.0
    %961 = vmatprep.subr.mxu0 0.0
    %962 = vmatpush2.msra.mxu0 0.0
    %963 = vmatprep.subr.mxu0 0.0
    %964 = vmatpush2.msra.mxu0 0.0
    %965 = vmatprep.subr.mxu0 0.0
    %966 = vmatpush2.msra.mxu0 0.0
    %967 = vmatprep.subr.mxu0 0.0
    %968 = vmatpush2.msra.mxu0 0.0
    %969 = vmatprep.subr.mxu0 0.0
    %970 = vmatpush2.msra.mxu0 0.0
    %971 = vmatprep.subr.mxu0 0.0
    %972 = vmatpush2.msra.mxu0 0.0
    %973 = vmatprep.mubr.f32.mxu0 0.0
    %974 = vmatmul.mubr.f32.gmra.mxu0 %v907
    %v975 = vpop.f32.mrf.mxu0
    %v976 = vadd.f32 0.0, %v975
    %v977 = vpop.f32.mrf.mxu0
    %978 = vdwg.mxu0
    %v979 = vmul.f32 %v976, 0.015625
    %vm980 = vcmask 8192
    %981 = vst.msk [vmem:[#allocation2] sm:$0x1] %vm980, %v979
    // Predicated region
    $region14: #{_mean_loss_fused.1} parent=1 // pred_check
      _
    $region15: #{_mean_loss_fused.1} parent=1 // pred_check_branch
      %983 = sbr.rel (0) target = $region17
    $region16: #{_mean_loss_fused.1} parent=1 // pred_region
      %s985 = ssub.s32 16, 16
      %986 = vsyncadd [#allocation3], %s985
      %s988 = sshll.u32 [#allocation2], 4
      %s989 = int_to_ptr.vmem [resolvable:$true] %s988
      %991 = dma.vmem_to_hbm [thread:$0]  %s989, 16, %s3, [#allocation3]
    $region17: #{_mean_loss_fused.1} parent=1 // pred_fallthru
      _
    // Predicated region
    $region18: #{_mean_loss_fused.1} parent=1 // pred_check
      _
    $region19: #{_mean_loss_fused.1} parent=1 // pred_check_branch
      %993 = sbr.rel (0) target = $region21
    $region20: #{_mean_loss_fused.1} parent=1 // pred_region
      %s995 = ssub.s32 256, 256
      %996 = vsyncadd [#allocation5], %s995
      %s997 = sshll.u32 [#allocation4], 4
      %s998 = int_to_ptr.vmem [resolvable:$true] %s997
      %1003 = dma.vmem_to_hbm [thread:$0]  %s998, 256, %s4, [#allocation5], 128, 128, 8
    $region21: #{_mean_loss_fused.1} parent=1 // pred_fallthru
      _
    // Predicated region
    $region22: #{_mean_loss_fused.1} parent=1 // pred_check
      _
    $region23: #{_mean_loss_fused.1} parent=1 // pred_check_branch
      %1005 = sbr.rel (0) target = $region25
    $region24: #{_mean_loss_fused.1} parent=1 // pred_region
      %1006 = dma.done [#allocation3], 16
    $region25: #{_mean_loss_fused.1} parent=1 // pred_fallthru
      _
    // Predicated region
    $region26: #{_mean_loss_fused.1} parent=1 // pred_check
      _
    $region27: #{_mean_loss_fused.1} parent=1 // pred_check_branch
      %1008 = sbr.rel (0) target = $region29
    $region28: #{_mean_loss_fused.1} parent=1 // pred_region
      %1009 = dma.done [#allocation5], 256
    $region29: #{_mean_loss_fused.1} parent=1 // pred_fallthru
      _
    %1010 = vsyncpa [#allocation3], 1
    %1011 = vsyncpa [#allocation5], 1

</llo_original>
